<compile_context>
chip_gen: v5e
topology: v5e:2x2
jax: 0.10.0
libtpu: 0.0.40
codegen_flags: <defaults>
</compile_context>

<pallas_src>
import functools
import math

import jax
import jax.numpy as jnp
from jax import lax
from jax.experimental import pallas as pl
from jax.experimental.pallas import tpu as pltpu


def _round_up(x: int, m: int) -> int:
    return ((x + m - 1) // m) * m


def _linear_kernel(x_ref, w_ref, o_ref, acc_ref):
    # grid = (Mp//tm, Np//tn, Kp//tk); K is the reduction axis (last, "arbitrary").
    @pl.when(pl.program_id(2) == 0)
    def _():
        acc_ref[...] = jnp.zeros_like(acc_ref)

    # x tile: (tm, tk); weight tile: (tn, tk) stored as (out, in) -> contract on dim 1/1.
    acc_ref[...] += lax.dot_general(
        x_ref[...],
        w_ref[...],
        dimension_numbers=(((1,), (1,)), ((), ())),
        preferred_element_type=jnp.float32,
    )

    @pl.when(pl.program_id(2) == pl.num_programs(2) - 1)
    def _():
        o_ref[...] = acc_ref[...].astype(o_ref.dtype)


def _linear_bias_kernel(x_ref, w_ref, b_ref, o_ref, acc_ref):
    @pl.when(pl.program_id(2) == 0)
    def _():
        acc_ref[...] = jnp.zeros_like(acc_ref)

    acc_ref[...] += lax.dot_general(
        x_ref[...],
        w_ref[...],
        dimension_numbers=(((1,), (1,)), ((), ())),
        preferred_element_type=jnp.float32,
    )

    @pl.when(pl.program_id(2) == pl.num_programs(2) - 1)
    def _():
        # Fused bias add in the epilogue (b_ref is (1, tn), broadcasts over tm rows).
        o_ref[...] = (acc_ref[...] + b_ref[...].astype(jnp.float32)).astype(o_ref.dtype)


@functools.partial(jax.jit, static_argnames=("tm", "tn", "tk"))
def linear_forward(x, weight, bias=None, *, tm=None, tn=None, tk=None):
    """y = x @ weight.T (+ bias). weight: (out_features, in_features)."""
    orig_shape = x.shape
    K = orig_shape[-1]
    N, Kw = weight.shape
    assert Kw == K, "weight in_features must match x's last dim"
    M = math.prod(orig_shape[:-1]) if len(orig_shape) > 1 else 1

    # ---- Tile selection: biggest MXU-friendly tiles that the problem supports. ----
    if tm is None:
        tm = min(256, _round_up(M, 8))
    if tn is None:
        tn = min(256, _round_up(N, 128))
    if tk is None:
        tk = min(512, _round_up(K, 128))

    Mp, Np, Kp = _round_up(M, tm), _round_up(N, tn), _round_up(K, tk)

    # ---- Pad to tile multiples (zero pad on K is exact for the matmul). ----
    x2d = x.reshape(M, K)
    if (Mp, Kp) != (M, K):
        x2d = jnp.pad(x2d, ((0, Mp - M), (0, Kp - K)))
    w = weight
    if (Np, Kp) != (N, K):
        w = jnp.pad(w, ((0, Np - N), (0, Kp - K)))

    # ---- Explicit VMEM budget for the enlarged tiles (double-buffered ins/outs + acc). ----
    bx = x2d.dtype.itemsize
    bw = w.dtype.itemsize
    bo = jnp.dtype(x.dtype).itemsize
    needed = 2 * (tm * tk * bx + tn * tk * bw + tm * tn * bo) + tm * tn * 4 + 2 * tn * 4
    vmem_limit = int(min(max(needed + (16 << 20), 32 << 20), 64 << 20))

    grid = (Mp // tm, Np // tn, Kp // tk)

    in_specs = [
        pl.BlockSpec((tm, tk), lambda i, j, k: (i, k)),   # x tile
        pl.BlockSpec((tn, tk), lambda i, j, k: (j, k)),   # weight tile, stored (N, K)
    ]
    args = [x2d, w]

    if bias is not None:
        b = bias
        if Np != N:
            b = jnp.pad(b, (0, Np - N))
        b2d = b.reshape(1, Np)
        in_specs.append(pl.BlockSpec((1, tn), lambda i, j, k: (0, j)))
        args.append(b2d)
        kernel = _linear_bias_kernel
    else:
        kernel = _linear_kernel

    out2d = pl.pallas_call(
        kernel,
        out_shape=jax.ShapeDtypeStruct((Mp, Np), x.dtype),
        grid_spec=pltpu.PrefetchScalarGridSpec(
            num_scalar_prefetch=0,
            grid=grid,
            in_specs=in_specs,
            out_specs=pl.BlockSpec((tm, tn), lambda i, j, k: (i, j)),
            scratch_shapes=[pltpu.VMEM((tm, tn), jnp.float32)],
        ),
        compiler_params=pltpu.CompilerParams(
            dimension_semantics=("parallel", "parallel", "arbitrary"),
            vmem_limit_bytes=vmem_limit,
        ),
    )(*args)

    out2d = out2d[:M, :N]
    return out2d.reshape(*orig_shape[:-1], N)


if __name__ == "__main__":
    key = jax.random.PRNGKey(0)

    # --- Test 1: module-default config (bias=False), aligned small shapes. ---
    batch, seq, in_features, out_features = 2, 8, 128, 256
    k1, k2, key = jax.random.split(key, 3)
    weight = 0.02 * jax.random.truncated_normal(
        k1, -2.0, 2.0, (out_features, in_features), dtype=jnp.float32
    )
    x = jax.random.normal(k2, (batch, seq, in_features), dtype=jnp.float32)

    y = jax.block_until_ready(linear_forward(x, weight))
    y_ref = x @ weight.T
    assert y.shape == (batch, seq, out_features)
    assert jnp.allclose(y, y_ref, atol=1e-4, rtol=1e-4)

    # --- Test 2: non-tile-aligned shapes + fused bias (exercises padding path). ---
    batch2, seq2, in2, out2 = 2, 5, 192, 320
    k3, k4, k5, key = jax.random.split(key, 4)
    weight2 = 0.02 * jax.random.truncated_normal(
        k3, -2.0, 2.0, (out2, in2), dtype=jnp.float32
    )
    bias2 = jax.random.normal(k4, (out2,), dtype=jnp.float32)
    x2 = jax.random.normal(k5, (batch2, seq2, in2), dtype=jnp.float32)

    y2 = jax.block_until_ready(linear_forward(x2, weight2, bias2))
    y2_ref = x2 @ weight2.T + bias2
    assert y2.shape == (batch2, seq2, out2)
    assert jnp.allclose(y2, y2_ref, atol=1e-4, rtol=1e-4)

    print("KERNEL_OK")
</pallas_src>

<mosaic_0001>
module attributes {stable_mosaic.version = 11 : i64} {
  func.func @_linear_kernel(%arg0: i32, %arg1: i32, %arg2: i32, %arg3: memref<16x128xf32, #tpu.memory_space<vmem>>, %arg4: memref<256x128xf32, #tpu.memory_space<vmem>>, %arg5: memref<16x256xf32, #tpu.memory_space<vmem>>, %arg6: memref<16x256xf32, #tpu.memory_space<vmem>>) attributes {dimension_semantics = [#tpu.dimension_semantics<parallel>, #tpu.dimension_semantics<parallel>, #tpu.dimension_semantics<arbitrary>], iteration_bounds = array<i64: 1, 1, 1>, scalar_prefetch = 0 : i64, scratch_operands = 1 : i64, tpu.core_type = #tpu.core_type<tc>, window_params = [{transform_indices = @transform_0, window_bounds = array<i64: 16, 128>}, {transform_indices = @transform_1, window_bounds = array<i64: 256, 128>}, {transform_indices = @transform_2, window_bounds = array<i64: 16, 256>}]} {
    %c0_i32 = arith.constant 0 : i32
    %0 = arith.cmpi eq, %arg2, %c0_i32 : i32
    %1 = arith.extui %0 : i1 to i32
    %c0_i32_0 = arith.constant 0 : i32
    %2 = arith.cmpi ne, %1, %c0_i32_0 : i32
    scf.if %2 {
      %cst_10 = arith.constant 0.000000e+00 : f32
      %12 = vector.broadcast %cst_10 : f32 to vector<16x256xf32>
      %c0_11 = arith.constant 0 : index
      %c0_12 = arith.constant 0 : index
      %13 = vector.load %arg6[%c0_11, %c0_12] : memref<16x256xf32, #tpu.memory_space<vmem>>, vector<16x256xf32>
      tpu.vector_store %arg6[%c0_11, %c0_12], %12 {strides = array<i32>} : memref<16x256xf32, #tpu.memory_space<vmem>>, vector<16x256xf32>,
    } else {
    }
    %c0 = arith.constant 0 : index
    %c0_1 = arith.constant 0 : index
    %3 = vector.load %arg6[%c0, %c0_1] : memref<16x256xf32, #tpu.memory_space<vmem>>, vector<16x256xf32>
    %c0_2 = arith.constant 0 : index
    %c0_3 = arith.constant 0 : index
    %4 = vector.load %arg3[%c0_2, %c0_3] : memref<16x128xf32, #tpu.memory_space<vmem>>, vector<16x128xf32>
    %c0_4 = arith.constant 0 : index
    %c0_5 = arith.constant 0 : index
    %5 = vector.load %arg4[%c0_4, %c0_5] : memref<256x128xf32, #tpu.memory_space<vmem>>, vector<256x128xf32>
    %cst = arith.constant dense<0.000000e+00> : vector<16x256xf32>
    %6 = tpu.matmul %4, %5, %cst {dimension_numbers = #tpu.dot_dimension_numbers<[1], [1], [0], [0], [0, 0, 1, 0], [], []>} : vector<16x128xf32>, vector<256x128xf32>, vector<16x256xf32> -> vector<16x256xf32>
    %7 = arith.addf %3, %6 : vector<16x256xf32>
    %c0_6 = arith.constant 0 : index
    %c0_7 = arith.constant 0 : index
    %8 = vector.load %arg6[%c0_6, %c0_7] : memref<16x256xf32, #tpu.memory_space<vmem>>, vector<16x256xf32>
    tpu.vector_store %arg6[%c0_6, %c0_7], %7 {strides = array<i32>} : memref<16x256xf32, #tpu.memory_space<vmem>>, vector<16x256xf32>,
    %c0_i32_8 = arith.constant 0 : i32
    %9 = arith.cmpi eq, %arg2, %c0_i32_8 : i32
    %10 = arith.extui %9 : i1 to i32
    %c0_i32_9 = arith.constant 0 : i32
    %11 = arith.cmpi ne, %10, %c0_i32_9 : i32
    scf.if %11 {
      %c0_10 = arith.constant 0 : index
      %c0_11 = arith.constant 0 : index
      %12 = vector.load %arg6[%c0_10, %c0_11] : memref<16x256xf32, #tpu.memory_space<vmem>>, vector<16x256xf32>
      %c0_12 = arith.constant 0 : index
      %c0_13 = arith.constant 0 : index
      %13 = vector.load %arg5[%c0_12, %c0_13] : memref<16x256xf32, #tpu.memory_space<vmem>>, vector<16x256xf32>
      tpu.vector_store %arg5[%c0_12, %c0_13], %12 {strides = array<i32>} : memref<16x256xf32, #tpu.memory_space<vmem>>, vector<16x256xf32>,
    } else {
    }
    return
  }
  func.func @transform_0(%arg0: i32, %arg1: i32, %arg2: i32) -> (i32, i32) {
    %c0_i32 = arith.constant 0 : i32
    return %arg0, %arg2 : i32, i32
  }
  func.func @transform_1(%arg0: i32, %arg1: i32, %arg2: i32) -> (i32, i32) {
    %c0_i32 = arith.constant 0 : i32
    return %arg1, %arg2 : i32, i32
  }
  func.func @transform_2(%arg0: i32, %arg1: i32, %arg2: i32) -> (i32, i32) {
    %c0_i32 = arith.constant 0 : i32
    return %arg0, %arg1 : i32, i32
  }
}

</mosaic_0001>

<llo_original>
// kernel: linear_forward.1
$region0: #{linear_forward.1}
  #allocation0 [shape = 'u32[]', space=smem, size = 0x4, offset = 0x4, fixed_abs, tag = 'smem constant byte address 0x4 - core index']
  #allocation1 [shape = 'u32[72,128]{1,0:T(1,128)}', space=vmem, size = 0x9000, scoped, tag = 'internal scratch']
  #allocation2 [shape = 'f32[16,256]{1,0:T(8,128)}', space=vmem, size = 0x4000, scoped, tag = 'scratch operand']
  %s0 = inlined_call_operand.hbm [shape: f32[16,128], index: 0, kind: input, shape index: {}]
  %s1 = inlined_call_operand.hbm [shape: f32[256,128], index: 1, kind: input, shape index: {}]
  %s2 = inlined_call_operand.hbm [shape: f32[16,256], index: 2, kind: output, shape index: {}]
  %s3 = sld [smem:[#allocation0]]
  $region34: #{linear_forward.1} parent=0
    _
  %s5 = ssub.s32 1, %s3
  %s6 = scalar_select 0, %s5, %s3
  $region1: #{linear_forward.1} parent=0
    #allocation3 [shape = 'u8[8192]{0}', space=vmem, size = 0x2000, scoped, tag = 'input window, operand 0, single buffered']
    #allocation4 [shape = 's32[1]{0}', space=sflag, size = 0x4, scoped, tag = 'scoped memory for linear_forward.1']
    #allocation5 [shape = 's32[1]{0}', space=sflag, size = 0x4, scoped, tag = 'scoped memory for linear_forward.1']
    #allocation6 [shape = 'u8[131072]{0}', space=vmem, size = 0x20000, scoped, tag = 'input window, operand 1, single buffered']
    #allocation7 [shape = 's32[1]{0}', space=sflag, size = 0x4, scoped, tag = 'scoped memory for linear_forward.1']
    #allocation8 [shape = 'u8[16384]{0}', space=vmem, size = 0x4000, scoped, tag = 'output window, operand 0, single buffered']
    %7 = vsyncpa [#allocation4], 0
    %8 = vsyncpa [#allocation7], 0
    %9 = vsyncpa [#allocation5], 0
    // Predicated region
    $region2: #{linear_forward.1} parent=1 // pred_check
      _
    $region3: #{linear_forward.1} parent=1 // pred_check_branch
      %11 = sbr.rel (0) target = $region5
    $region4: #{linear_forward.1} parent=1 // pred_region
      %13 = vsyncadd [#allocation4], 0
      %s14 = sshll.u32 %s0, 4
      %s15 = int_to_ptr.hbm [resolvable:$true] %s14
      %s16 = sshll.u32 [#allocation3], 4
      %s17 = int_to_ptr.vmem [resolvable:$true] %s16
      %22 = dma.hbm_to_vmem [thread:$0]  %s15, 256, %s17, [#allocation4], 128, 128, 8
    $region5: #{linear_forward.1} parent=1 // pred_fallthru
      _
    // Predicated region
    $region6: #{linear_forward.1} parent=1 // pred_check
      _
    $region7: #{linear_forward.1} parent=1 // pred_check_branch
      %24 = sbr.rel (0) target = $region9
    $region8: #{linear_forward.1} parent=1 // pred_region
      %26 = vsyncadd [#allocation7], 0
      %s27 = sshll.u32 %s1, 4
      %s28 = int_to_ptr.hbm [resolvable:$true] %s27
      %s29 = sshll.u32 [#allocation6], 4
      %s30 = int_to_ptr.vmem [resolvable:$true] %s29
      %35 = dma.hbm_to_vmem [thread:$0]  %s28, 4096, %s30, [#allocation7], 128, 128, 8
    $region9: #{linear_forward.1} parent=1 // pred_fallthru
      _
    // Predicated region
    $region10: #{linear_forward.1} parent=1 // pred_check
      _
    $region11: #{linear_forward.1} parent=1 // pred_check_branch
      %37 = sbr.rel (0) target = $region13
    $region12: #{linear_forward.1} parent=1 // pred_region
      %39 = dma.done [#allocation4], 256
    $region13: #{linear_forward.1} parent=1 // pred_fallthru
      _
    // Predicated region
    $region14: #{linear_forward.1} parent=1 // pred_check
      _
    $region15: #{linear_forward.1} parent=1 // pred_check_branch
      %41 = sbr.rel (0) target = $region17
    $region16: #{linear_forward.1} parent=1 // pred_region
      %43 = dma.done [#allocation7], 4096
    $region17: #{linear_forward.1} parent=1 // pred_fallthru
      _
    %p44 = scmp.eq.s32.totalorder 0, 0
    // Predicated region
    $region18: #{linear_forward.1} parent=1 // pred_check
      %p45 = pneg %p44
    $region19: #{linear_forward.1} parent=1 // pred_check_branch
      %47 = sbr.rel (%p45) target = $region21
    $region20: #{linear_forward.1} parent=1 // pred_region
      %48 = vst [vmem:[#allocation2] sm:$0xff] 0.0
      %49 = vst [vmem:[#allocation2 + $0x8] sm:$0xff] 0.0
      %50 = vst [vmem:[#allocation2 + $0x10] sm:$0xff] 0.0
      %51 = vst [vmem:[#allocation2 + $0x18] sm:$0xff] 0.0
    $region21: #{linear_forward.1} parent=1 // pred_fallthru
      _
    %v52 = vld [vmem:[#allocation2] sm:$0xff]
    %v53 = vld [vmem:[#allocation2 + $0x8] sm:$0xff]
    %v54 = vld [vmem:[#allocation2 + $0x10] sm:$0xff]
    %v55 = vld [vmem:[#allocation2 + $0x18] sm:$0xff]
    %v56 = vld [vmem:[#allocation3] sm:$0xff]
    %v57 = vld [vmem:[#allocation3 + $0x8] sm:$0xff]
    %v58 = vld [vmem:[#allocation6] sm:$0xff]
    %v59 = vld [vmem:[#allocation6 + $0x8] sm:$0xff]
    %v60 = vld [vmem:[#allocation6 + $0x10] sm:$0xff]
    %v61 = vld [vmem:[#allocation6 + $0x18] sm:$0xff]
    %v62 = vld [vmem:[#allocation6 + $0x20] sm:$0xff]
    %v63 = vld [vmem:[#allocation6 + $0x28] sm:$0xff]
    %v64 = vld [vmem:[#allocation6 + $0x30] sm:$0xff]
    %v65 = vld [vmem:[#allocation6 + $0x38] sm:$0xff]
    %v66 = vld [vmem:[#allocation6 + $0x40] sm:$0xff]
    %v67 = vld [vmem:[#allocation6 + $0x48] sm:$0xff]
    %v68 = vld [vmem:[#allocation6 + $0x50] sm:$0xff]
    %v69 = vld [vmem:[#allocation6 + $0x58] sm:$0xff]
    %v70 = vld [vmem:[#allocation6 + $0x60] sm:$0xff]
    %v71 = vld [vmem:[#allocation6 + $0x68] sm:$0xff]
    %v72 = vld [vmem:[#allocation6 + $0x70] sm:$0xff]
    %v73 = vld [vmem:[#allocation6 + $0x78] sm:$0xff]
    %v74 = vld [vmem:[#allocation6 + $0x80] sm:$0xff]
    %v75 = vld [vmem:[#allocation6 + $0x88] sm:$0xff]
    %v76 = vld [vmem:[#allocation6 + $0x90] sm:$0xff]
    %v77 = vld [vmem:[#allocation6 + $0x98] sm:$0xff]
    %v78 = vld [vmem:[#allocation6 + $0xa0] sm:$0xff]
    %v79 = vld [vmem:[#allocation6 + $0xa8] sm:$0xff]
    %v80 = vld [vmem:[#allocation6 + $0xb0] sm:$0xff]
    %v81 = vld [vmem:[#allocation6 + $0xb8] sm:$0xff]
    %v82 = vld [vmem:[#allocation6 + $0xc0] sm:$0xff]
    %v83 = vld [vmem:[#allocation6 + $0xc8] sm:$0xff]
    %v84 = vld [vmem:[#allocation6 + $0xd0] sm:$0xff]
    %v85 = vld [vmem:[#allocation6 + $0xd8] sm:$0xff]
    %v86 = vld [vmem:[#allocation6 + $0xe0] sm:$0xff]
    %v87 = vld [vmem:[#allocation6 + $0xe8] sm:$0xff]
    %v88 = vld [vmem:[#allocation6 + $0xf0] sm:$0xff]
    %v89 = vld [vmem:[#allocation6 + $0xf8] sm:$0xff]
    %90 = vmatpush.xpose.msra.mxu0 %v73
    %91 = vmatpush.xpose.msra.mxu0 %v72
    %92 = vmatpush.xpose.msra.mxu0 %v71
    %93 = vmatpush.xpose.msra.mxu0 %v70
    %94 = vmatpush.xpose.msra.mxu0 %v69
    %95 = vmatpush.xpose.msra.mxu0 %v68
    %96 = vmatpush.xpose.msra.mxu0 %v67
    %97 = vmatpush.xpose.msra.mxu0 %v66
    %98 = vmatpush.xpose.msra.mxu0 %v65
    %99 = vmatpush.xpose.msra.mxu0 %v64
    %100 = vmatpush.xpose.msra.mxu0 %v63
    %101 = vmatpush.xpose.msra.mxu0 %v62
    %102 = vmatpush.xpose.msra.mxu0 %v61
    %103 = vmatpush.xpose.msra.mxu0 %v60
    %104 = vmatpush.xpose.msra.mxu0 %v59
    %105 = vmatpush.xpose.msra.mxu0 %v58
    %106 = vmatmul.f32.gmra.mxu0 %v56
    %v107 = vpop.f32.mrf.mxu0
    %v108 = vadd.f32 0.0, %v107
    %109 = vmatmul.f32.gmra.mxu0 %v57
    %v110 = vpop.f32.mrf.mxu0
    %v111 = vadd.f32 0.0, %v110
    %112 = vdwg.mxu0
    %113 = vmatpush.xpose.msra.mxu0 %v89
    %114 = vmatpush.xpose.msra.mxu0 %v88
    %115 = vmatpush.xpose.msra.mxu0 %v87
    %116 = vmatpush.xpose.msra.mxu0 %v86
    %117 = vmatpush.xpose.msra.mxu0 %v85
    %118 = vmatpush.xpose.msra.mxu0 %v84
    %119 = vmatpush.xpose.msra.mxu0 %v83
    %120 = vmatpush.xpose.msra.mxu0 %v82
    %121 = vmatpush.xpose.msra.mxu0 %v81
    %122 = vmatpush.xpose.msra.mxu0 %v80
    %123 = vmatpush.xpose.msra.mxu0 %v79
    %124 = vmatpush.xpose.msra.mxu0 %v78
    %125 = vmatpush.xpose.msra.mxu0 %v77
    %126 = vmatpush.xpose.msra.mxu0 %v76
    %127 = vmatpush.xpose.msra.mxu0 %v75
    %128 = vmatpush.xpose.msra.mxu0 %v74
    %129 = vmatmul.f32.gmra.mxu0 %v56
    %v130 = vpop.f32.mrf.mxu0
    %v131 = vadd.f32 0.0, %v130
    %132 = vmatmul.f32.gmra.mxu0 %v57
    %v133 = vpop.f32.mrf.mxu0
    %v134 = vadd.f32 0.0, %v133
    %135 = vdwg.mxu0
    %v136 = vadd.f32 %v52, %v108
    %v137 = vadd.f32 %v53, %v131
    %v138 = vadd.f32 %v54, %v111
    %v139 = vadd.f32 %v55, %v134
    %140 = vst [vmem:[#allocation2] sm:$0xff] %v136
    %141 = vst [vmem:[#allocation2 + $0x8] sm:$0xff] %v137
    %142 = vst [vmem:[#allocation2 + $0x10] sm:$0xff] %v138
    %143 = vst [vmem:[#allocation2 + $0x18] sm:$0xff] %v139
    // Predicated region
    $region22: #{linear_forward.1} parent=1 // pred_check
      %p144 = pneg %p44
    $region23: #{linear_forward.1} parent=1 // pred_check_branch
      %146 = sbr.rel (%p144) target = $region25
    $region24: #{linear_forward.1} parent=1 // pred_region
      %v147 = vld [vmem:[#allocation2] sm:$0xff]
      %v148 = vld [vmem:[#allocation2 + $0x8] sm:$0xff]
      %v149 = vld [vmem:[#allocation2 + $0x10] sm:$0xff]
      %v150 = vld [vmem:[#allocation2 + $0x18] sm:$0xff]
      %151 = vst [vmem:[#allocation8] sm:$0xff] %v147
      %152 = vst [vmem:[#allocation8 + $0x8] sm:$0xff] %v148
      %153 = vst [vmem:[#allocation8 + $0x10] sm:$0xff] %v149
      %154 = vst [vmem:[#allocation8 + $0x18] sm:$0xff] %v150
    $region25: #{linear_forward.1} parent=1 // pred_fallthru
      _
    // Predicated region
    $region26: #{linear_forward.1} parent=1 // pred_check
      _
    $region27: #{linear_forward.1} parent=1 // pred_check_branch
      %156 = sbr.rel (0) target = $region29
    $region28: #{linear_forward.1} parent=1 // pred_region
      %158 = vsyncadd [#allocation5], 0
      %s159 = sshll.u32 [#allocation8], 4
      %s160 = int_to_ptr.vmem [resolvable:$true] %s159
      %s161 = sshll.u32 %s2, 4
      %s162 = int_to_ptr.hbm [resolvable:$true] %s161
      %167 = dma.vmem_to_hbm [thread:$0]  %s160, 512, %s162, [#allocation5], 256, 256, 16
    $region29: #{linear_forward.1} parent=1 // pred_fallthru
      _
    // Predicated region
    $region30: #{linear_forward.1} parent=1 // pred_check
      _
    $region31: #{linear_forward.1} parent=1 // pred_check_branch
      %169 = sbr.rel (0) target = $region33
    $region32: #{linear_forward.1} parent=1 // pred_region
      %171 = dma.done [#allocation5], 512
    $region33: #{linear_forward.1} parent=1 // pred_fallthru
      _
    %172 = vsyncpa [#allocation4], 1
    %173 = vsyncpa [#allocation7], 1
    %174 = vsyncpa [#allocation5], 1

</llo_original>
